<compile_context>
chip_gen: v7x
topology: tpu7x:2x2x1
jax: 0.10.0
libtpu: 0.0.40
codegen_flags: <defaults>
</compile_context>

<pallas_src>
import jax
import jax.numpy as jnp
from jax.experimental import pallas as pl
from jax.experimental.pallas import tpu as pltpu


LANE = 128
SUBLANE = 8


def _round_up(n, m):
    return ((n + m - 1) // m) * m


def _fused_gcn_kernel(x_ref, adj_ref, w1_ref, b1_ref, w2_ref, b2_ref, o_ref):
    """out = adj @ relu(adj @ (x @ w1) + b1) @ w2 + b2, entirely in VMEM."""
    x = x_ref[...]      # bf16 (Np, Fp)
    adj = adj_ref[...]  # bf16 (Np, Np)

    # ---- layer 1: h = relu(adj @ (x @ w1) + b1) ----
    s1 = jnp.dot(x, w1_ref[...], preferred_element_type=jnp.float32)           # (Np, Hp) f32
    h = jnp.dot(adj, s1.astype(jnp.bfloat16), preferred_element_type=jnp.float32)
    h = jnp.maximum(h + b1_ref[...], 0.0)                                       # f32 epilogue (VPU)

    # TODO(synk): F.dropout(training=True) path not implemented; eval-mode identity.

    # ---- layer 2: out = adj @ (h @ w2) + b2 ----
    s2 = jnp.dot(h.astype(jnp.bfloat16), w2_ref[...], preferred_element_type=jnp.float32)
    out = jnp.dot(adj, s2.astype(jnp.bfloat16), preferred_element_type=jnp.float32)
    out = out + b2_ref[...]

    o_ref[...] = out.astype(o_ref.dtype)  # lane-dense (Np, 128k) unmasked store


def gcn_forward(x, adj, params):
    """GCN.forward in eval mode (dropout is identity at eval)."""
    (w1, b1), (w2, b2) = params
    n, nfeat = x.shape
    nhid = w1.shape[1]
    nclass = w2.shape[1]

    n_p = _round_up(n, SUBLANE)
    feat_p = _round_up(nfeat, LANE)
    hid_p = _round_up(nhid, LANE)
    cls_p = _round_up(nclass, LANE)

    # bf16 MXU operands; zero-pad every axis to a (8, 128)-aligned tile.
    xb = jnp.pad(x, ((0, n_p - n), (0, feat_p - nfeat))).astype(jnp.bfloat16)
    adjb = jnp.pad(adj, ((0, n_p - n), (0, n_p - n))).astype(jnp.bfloat16)
    w1p = jnp.pad(w1, ((0, feat_p - nfeat), (0, hid_p - nhid))).astype(jnp.bfloat16)
    b1p = jnp.pad(b1, ((0, 0), (0, hid_p - nhid))).astype(jnp.float32)
    w2p = jnp.pad(w2, ((0, hid_p - nhid), (0, cls_p - nclass))).astype(jnp.bfloat16)
    b2p = jnp.pad(b2, ((0, 0), (0, cls_p - nclass))).astype(jnp.float32)

    out_padded = pl.pallas_call(
        _fused_gcn_kernel,
        out_shape=jax.ShapeDtypeStruct((n_p, cls_p), jnp.float32),
        # Small problem: whole arrays fit comfortably in VMEM, so each block is
        # the full (padded, (8,128)-aligned) array.
        in_specs=[
            pl.BlockSpec((n_p, feat_p), lambda: (0, 0)),
            pl.BlockSpec((n_p, n_p), lambda: (0, 0)),
            pl.BlockSpec((feat_p, hid_p), lambda: (0, 0)),
            pl.BlockSpec((1, hid_p), lambda: (0, 0)),
            pl.BlockSpec((hid_p, cls_p), lambda: (0, 0)),
            pl.BlockSpec((1, cls_p), lambda: (0, 0)),
        ],
        out_specs=pl.BlockSpec((n_p, cls_p), lambda: (0, 0)),
        compiler_params=pltpu.CompilerParams(vmem_limit_bytes=64 * 1024 * 1024),
    )(xb, adjb, w1p, b1p, w2p, b2p)

    # Slice away node/lane padding; return caller dtype.
    return out_padded[:n, :nclass].astype(x.dtype)


def xavier_uniform(key, shape, fan_in, fan_out, dtype=jnp.float32):
    bound = (6.0 / (fan_in + fan_out)) ** 0.5
    return jax.random.uniform(key, shape, dtype=dtype, minval=-bound, maxval=bound)


def init_gcn_params(key, nfeat, nhid, nclass):
    k1, k2, k3, k4 = jax.random.split(key, 4)
    # Layer 1: GCNLayers(nfeat, nhid)
    w1 = xavier_uniform(k1, (nfeat, nhid), fan_in=nfeat, fan_out=nhid)
    # bias is xavier_uniform_ on shape (1, nhid): fan_in=nhid, fan_out=1
    b1 = xavier_uniform(k2, (1, nhid), fan_in=nhid, fan_out=1)
    # Layer 2: GCNLayers(nhid, nclass)
    w2 = xavier_uniform(k3, (nhid, nclass), fan_in=nhid, fan_out=nclass)
    b2 = xavier_uniform(k4, (1, nclass), fan_in=nclass, fan_out=1)
    return (w1, b1), (w2, b2)


def _reference_forward_bf16(x, adj, params):
    """Plain-JAX reference mirroring the kernel's bf16-input / f32-accum math."""
    (w1, b1), (w2, b2) = params
    xb = x.astype(jnp.bfloat16)
    ab = adj.astype(jnp.bfloat16)
    s1 = jnp.dot(xb, w1.astype(jnp.bfloat16), preferred_element_type=jnp.float32)
    h = jnp.dot(ab, s1.astype(jnp.bfloat16), preferred_element_type=jnp.float32)
    h = jnp.maximum(h + b1.astype(jnp.float32), 0.0)
    s2 = jnp.dot(h.astype(jnp.bfloat16), w2.astype(jnp.bfloat16),
                 preferred_element_type=jnp.float32)
    out = jnp.dot(ab, s2.astype(jnp.bfloat16), preferred_element_type=jnp.float32)
    return out + b2.astype(jnp.float32)


if __name__ == "__main__":
    key = jax.random.PRNGKey(0)
    kx, kadj, kp = jax.random.split(key, 3)

    # small shapes: N nodes, nfeat -> nhid -> nclass
    N, nfeat, nhid, nclass = 64, 32, 32, 16

    x = jax.random.normal(kx, (N, nfeat), dtype=jnp.float32)
    # symmetric normalized-ish adjacency (dense, synthetic)
    a = jax.random.uniform(kadj, (N, N), dtype=jnp.float32)
    adj = (a + a.T) / (2.0 * N)

    params = init_gcn_params(kp, nfeat, nhid, nclass)

    out = gcn_forward(x, adj, params)
    out = jax.block_until_ready(out)

    # sanity check against a plain-JAX reference using the same bf16 math
    ref_out = _reference_forward_bf16(x, adj, params)
    assert out.shape == (N, nclass)
    assert jnp.allclose(out, ref_out, atol=1e-3, rtol=1e-3)

    print("KERNEL_OK")
</pallas_src>

<mosaic_0001>
module attributes {stable_mosaic.version = 11 : i64} {
  func.func @_fused_gcn_kernel(%arg0: memref<64x128xbf16, #tpu.memory_space<vmem>>, %arg1: memref<64x64xbf16, #tpu.memory_space<vmem>>, %arg2: memref<128x128xbf16, #tpu.memory_space<vmem>>, %arg3: memref<1x128xf32, #tpu.memory_space<vmem>>, %arg4: memref<128x128xbf16, #tpu.memory_space<vmem>>, %arg5: memref<1x128xf32, #tpu.memory_space<vmem>>, %arg6: memref<64x128xf32, #tpu.memory_space<vmem>>) attributes {dimension_semantics = [], scalar_prefetch = 0 : i64, scratch_operands = 0 : i64, tpu.core_type = #tpu.core_type<tc>} {
    %c0 = arith.constant 0 : index
    %c0_0 = arith.constant 0 : index
    %0 = vector.load %arg0[%c0, %c0_0] : memref<64x128xbf16, #tpu.memory_space<vmem>>, vector<64x128xbf16>
    %c0_1 = arith.constant 0 : index
    %c0_2 = arith.constant 0 : index
    %1 = vector.load %arg1[%c0_1, %c0_2] : memref<64x64xbf16, #tpu.memory_space<vmem>>, vector<64x64xbf16>
    %c0_3 = arith.constant 0 : index
    %c0_4 = arith.constant 0 : index
    %2 = vector.load %arg2[%c0_3, %c0_4] : memref<128x128xbf16, #tpu.memory_space<vmem>>, vector<128x128xbf16>
    %cst = arith.constant dense<0.000000e+00> : vector<64x128xf32>
    %3 = tpu.matmul %0, %2, %cst {dimension_numbers = #tpu.dot_dimension_numbers<[1], [0], [0], [1], [0, 0, 1, 1], [], []>} : vector<64x128xbf16>, vector<128x128xbf16>, vector<64x128xf32> -> vector<64x128xf32>
    %4 = arith.truncf %3 : vector<64x128xf32> to vector<64x128xbf16>
    %cst_5 = arith.constant dense<0.000000e+00> : vector<64x128xf32>
    %5 = tpu.matmul %1, %4, %cst_5 {dimension_numbers = #tpu.dot_dimension_numbers<[1], [0], [0], [1], [0, 0, 1, 1], [], []>} : vector<64x64xbf16>, vector<64x128xbf16>, vector<64x128xf32> -> vector<64x128xf32>
    %c0_6 = arith.constant 0 : index
    %c0_7 = arith.constant 0 : index
    %6 = vector.load %arg3[%c0_6, %c0_7] : memref<1x128xf32, #tpu.memory_space<vmem>>, vector<1x128xf32>
    %7 = vector.broadcast %6 : vector<1x128xf32> to vector<64x128xf32>
    %8 = arith.addf %5, %7 : vector<64x128xf32>
    %cst_8 = arith.constant 0.000000e+00 : f32
    %9 = vector.broadcast %cst_8 : f32 to vector<64x128xf32>
    %10 = arith.maximumf %8, %9 : vector<64x128xf32>
    %11 = arith.truncf %10 : vector<64x128xf32> to vector<64x128xbf16>
    %c0_9 = arith.constant 0 : index
    %c0_10 = arith.constant 0 : index
    %12 = vector.load %arg4[%c0_9, %c0_10] : memref<128x128xbf16, #tpu.memory_space<vmem>>, vector<128x128xbf16>
    %cst_11 = arith.constant dense<0.000000e+00> : vector<64x128xf32>
    %13 = tpu.matmul %11, %12, %cst_11 {dimension_numbers = #tpu.dot_dimension_numbers<[1], [0], [0], [1], [0, 0, 1, 1], [], []>} : vector<64x128xbf16>, vector<128x128xbf16>, vector<64x128xf32> -> vector<64x128xf32>
    %14 = arith.truncf %13 : vector<64x128xf32> to vector<64x128xbf16>
    %cst_12 = arith.constant dense<0.000000e+00> : vector<64x128xf32>
    %15 = tpu.matmul %1, %14, %cst_12 {dimension_numbers = #tpu.dot_dimension_numbers<[1], [0], [0], [1], [0, 0, 1, 1], [], []>} : vector<64x64xbf16>, vector<64x128xbf16>, vector<64x128xf32> -> vector<64x128xf32>
    %c0_13 = arith.constant 0 : index
    %c0_14 = arith.constant 0 : index
    %16 = vector.load %arg5[%c0_13, %c0_14] : memref<1x128xf32, #tpu.memory_space<vmem>>, vector<1x128xf32>
    %17 = vector.broadcast %16 : vector<1x128xf32> to vector<64x128xf32>
    %18 = arith.addf %15, %17 : vector<64x128xf32>
    %c0_15 = arith.constant 0 : index
    %c0_16 = arith.constant 0 : index
    %19 = vector.load %arg6[%c0_15, %c0_16] : memref<64x128xf32, #tpu.memory_space<vmem>>, vector<64x128xf32>
    tpu.vector_store %arg6[%c0_15, %c0_16], %18 {strides = array<i32>} : memref<64x128xf32, #tpu.memory_space<vmem>>, vector<64x128xf32>,
    return
  }
}

</mosaic_0001>

<llo_original>
// kernel: tpu_custom_call.1
$region0: #{tpu_custom_call.1}
  #allocation0 [shape = 'u32[]', space=smem, size = 0x4, offset = 0x4, fixed_abs, tag = 'smem constant byte address 0x4 - core index']
  #allocation1 [shape = 'u32[144,128]{1,0:T(1,128)}', space=vmem, size = 0x12000, scoped, tag = 'internal scratch']
  %s0 = inlined_call_operand.hbm [shape: bf16[64,128], index: 0, kind: input, shape index: {}]
  %s1 = inlined_call_operand.hbm [shape: bf16[64,64], index: 1, kind: input, shape index: {}]
  %s2 = inlined_call_operand.hbm [shape: bf16[128,128], index: 2, kind: input, shape index: {}]
  %s3 = inlined_call_operand.hbm [shape: f32[1,128], index: 3, kind: input, shape index: {}]
  %s4 = inlined_call_operand.hbm [shape: bf16[128,128], index: 4, kind: input, shape index: {}]
  %s5 = inlined_call_operand.hbm [shape: f32[1,128], index: 5, kind: input, shape index: {}]
  %s6 = inlined_call_operand.hbm [shape: f32[64,128], index: 6, kind: output, shape index: {}]
  %s7 = sld [smem:[#allocation0]]
  $region58: #{tpu_custom_call.1} parent=0
    _
  %s9 = ssub.s32 1, %s7
  %s10 = scalar_select 0, %s9, %s7
  $region1: #{tpu_custom_call.1} parent=0
    #allocation2 [shape = 'u8[16384]{0}', space=vmem, size = 0x4000, scoped, tag = 'input window, operand 0, single buffered']
    #allocation3 [shape = 's32[1]{0}', space=sflag, size = 0x4, scoped, tag = 'scoped memory for tpu_custom_call.1']
    #allocation4 [shape = 's32[1]{0}', space=sflag, size = 0x4, scoped, tag = 'scoped memory for tpu_custom_call.1']
    #allocation5 [shape = 'u8[16384]{0}', space=vmem, size = 0x4000, scoped, tag = 'input window, operand 1, single buffered']
    #allocation6 [shape = 's32[1]{0}', space=sflag, size = 0x4, scoped, tag = 'scoped memory for tpu_custom_call.1']
    #allocation7 [shape = 'u8[32768]{0}', space=vmem, size = 0x8000, scoped, tag = 'input window, operand 2, single buffered']
    #allocation8 [shape = 'u8[512]{0}', space=vmem, size = 0x400, scoped, tag = 'input window, operand 3, single buffered']
    #allocation9 [shape = 's32[1]{0}', space=sflag, size = 0x4, scoped, tag = 'scoped memory for tpu_custom_call.1']
    #allocation10 [shape = 'u8[32768]{0}', space=vmem, size = 0x8000, scoped, tag = 'input window, operand 4, single buffered']
    #allocation11 [shape = 'u8[512]{0}', space=vmem, size = 0x400, scoped, tag = 'input window, operand 5, single buffered']
    #allocation12 [shape = 's32[1]{0}', space=sflag, size = 0x4, scoped, tag = 'scoped memory for tpu_custom_call.1']
    #allocation13 [shape = 'u8[32768]{0}', space=vmem, size = 0x8000, scoped, tag = 'output window, operand 0, single buffered']
    %11 = vsyncpa [#allocation3], 0
    %12 = vsyncpa [#allocation6], 0
    %13 = vsyncpa [#allocation9], 0
    %14 = vsyncpa [#allocation12], 0
    %15 = vsyncpa [#allocation4], 0
    // Predicated region
    $region2: #{tpu_custom_call.1} parent=1 // pred_check
      _
    $region3: #{tpu_custom_call.1} parent=1 // pred_check_branch
      %17 = sbr.rel (0) target = $region5
    $region4: #{tpu_custom_call.1} parent=1 // pred_region
      %s19 = ssub.s32 512, 512
      %20 = vsyncadd [#allocation3], %s19
      %s21 = sshll.u32 [#allocation2], 4
      %s22 = int_to_ptr.vmem [resolvable:$true] %s21
      %27 = dma.hbm_to_vmem [thread:$0]  %s0, 512, %s22, [#allocation3], 64, 64, 4
    $region5: #{tpu_custom_call.1} parent=1 // pred_fallthru
      _
    // Predicated region
    $region6: #{tpu_custom_call.1} parent=1 // pred_check
      _
    $region7: #{tpu_custom_call.1} parent=1 // pred_check_branch
      %29 = sbr.rel (0) target = $region9
    $region8: #{tpu_custom_call.1} parent=1 // pred_region
      %s31 = ssub.s32 512, 512
      %32 = vsyncadd [#allocation6], %s31
      %s33 = sshll.u32 [#allocation5], 4
      %s34 = int_to_ptr.vmem [resolvable:$true] %s33
      %39 = dma.hbm_to_vmem [thread:$0]  %s1, 512, %s34, [#allocation6], 64, 64, 4
    $region9: #{tpu_custom_call.1} parent=1 // pred_fallthru
      _
    // Predicated region
    $region10: #{tpu_custom_call.1} parent=1 // pred_check
      _
    $region11: #{tpu_custom_call.1} parent=1 // pred_check_branch
      %41 = sbr.rel (0) target = $region13
    $region12: #{tpu_custom_call.1} parent=1 // pred_region
      %s43 = ssub.s32 1024, 1024
      %44 = vsyncadd [#allocation6], %s43
      %s45 = sshll.u32 [#allocation7], 4
      %s46 = int_to_ptr.vmem [resolvable:$true] %s45
      %51 = dma.hbm_to_vmem [thread:$0]  %s2, 1024, %s46, [#allocation6], 64, 64, 4
    $region13: #{tpu_custom_call.1} parent=1 // pred_fallthru
      _
    // Predicated region
    $region14: #{tpu_custom_call.1} parent=1 // pred_check
      _
    $region15: #{tpu_custom_call.1} parent=1 // pred_check_branch
      %53 = sbr.rel (0) target = $region17
    $region16: #{tpu_custom_call.1} parent=1 // pred_region
      %s55 = ssub.s32 16, 16
      %56 = vsyncadd [#allocation9], %s55
      %s58 = sshll.u32 [#allocation8], 4
      %s59 = int_to_ptr.vmem [resolvable:$true] %s58
      %61 = dma.hbm_to_vmem [thread:$0]  %s3, 16, %s59, [#allocation9]
    $region17: #{tpu_custom_call.1} parent=1 // pred_fallthru
      _
    // Predicated region
    $region18: #{tpu_custom_call.1} parent=1 // pred_check
      _
    $region19: #{tpu_custom_call.1} parent=1 // pred_check_branch
      %63 = sbr.rel (0) target = $region21
    $region20: #{tpu_custom_call.1} parent=1 // pred_region
      %s65 = ssub.s32 1024, 1024
      %66 = vsyncadd [#allocation9], %s65
      %s67 = sshll.u32 [#allocation10], 4
      %s68 = int_to_ptr.vmem [resolvable:$true] %s67
      %73 = dma.hbm_to_vmem [thread:$0]  %s4, 1024, %s68, [#allocation9], 64, 64, 4
    $region21: #{tpu_custom_call.1} parent=1 // pred_fallthru
      _
    // Predicated region
    $region22: #{tpu_custom_call.1} parent=1 // pred_check
      _
    $region23: #{tpu_custom_call.1} parent=1 // pred_check_branch
      %75 = sbr.rel (0) target = $region25
    $region24: #{tpu_custom_call.1} parent=1 // pred_region
      %s77 = ssub.s32 16, 16
      %78 = vsyncadd [#allocation12], %s77
      %s80 = sshll.u32 [#allocation11], 4
      %s81 = int_to_ptr.vmem [resolvable:$true] %s80
      %83 = dma.hbm_to_vmem [thread:$0]  %s5, 16, %s81, [#allocation12]
    $region25: #{tpu_custom_call.1} parent=1 // pred_fallthru
      _
    // Predicated region
    $region26: #{tpu_custom_call.1} parent=1 // pred_check
      _
    $region27: #{tpu_custom_call.1} parent=1 // pred_check_branch
      %85 = sbr.rel (0) target = $region29
    $region28: #{tpu_custom_call.1} parent=1 // pred_region
      %86 = dma.done [#allocation3], 512
    $region29: #{tpu_custom_call.1} parent=1 // pred_fallthru
      _
    // Predicated region
    $region30: #{tpu_custom_call.1} parent=1 // pred_check
      _
    $region31: #{tpu_custom_call.1} parent=1 // pred_check_branch
      %88 = sbr.rel (0) target = $region33
    $region32: #{tpu_custom_call.1} parent=1 // pred_region
      %89 = dma.done [#allocation6], 512
    $region33: #{tpu_custom_call.1} parent=1 // pred_fallthru
      _
    // Predicated region
    $region34: #{tpu_custom_call.1} parent=1 // pred_check
      _
    $region35: #{tpu_custom_call.1} parent=1 // pred_check_branch
      %91 = sbr.rel (0) target = $region37
    $region36: #{tpu_custom_call.1} parent=1 // pred_region
      %92 = dma.done [#allocation6], 1024
    $region37: #{tpu_custom_call.1} parent=1 // pred_fallthru
      _
    // Predicated region
    $region38: #{tpu_custom_call.1} parent=1 // pred_check
      _
    $region39: #{tpu_custom_call.1} parent=1 // pred_check_branch
      %94 = sbr.rel (0) target = $region41
    $region40: #{tpu_custom_call.1} parent=1 // pred_region
      %95 = dma.done [#allocation9], 16
    $region41: #{tpu_custom_call.1} parent=1 // pred_fallthru
      _
    // Predicated region
    $region42: #{tpu_custom_call.1} parent=1 // pred_check
      _
    $region43: #{tpu_custom_call.1} parent=1 // pred_check_branch
      %97 = sbr.rel (0) target = $region45
    $region44: #{tpu_custom_call.1} parent=1 // pred_region
      %98 = dma.done [#allocation9], 1024
    $region45: #{tpu_custom_call.1} parent=1 // pred_fallthru
      _
    // Predicated region
    $region46: #{tpu_custom_call.1} parent=1 // pred_check
      _
    $region47: #{tpu_custom_call.1} parent=1 // pred_check_branch
      %100 = sbr.rel (0) target = $region49
    $region48: #{tpu_custom_call.1} parent=1 // pred_region
      %101 = dma.done [#allocation12], 16
    $region49: #{tpu_custom_call.1} parent=1 // pred_fallthru
      _
    %v103 = vld [vmem:[#allocation2] sm:$0xf]
    %v104 = vld [vmem:[#allocation2 + $0x4] sm:$0xf]
    %v105 = vld [vmem:[#allocation2 + $0x8] sm:$0xf]
    %v106 = vld [vmem:[#allocation2 + $0xc] sm:$0xf]
    %v107 = vld [vmem:[#allocation2 + $0x10] sm:$0xf]
    %v108 = vld [vmem:[#allocation2 + $0x14] sm:$0xf]
    %v109 = vld [vmem:[#allocation2 + $0x18] sm:$0xf]
    %v110 = vld [vmem:[#allocation2 + $0x1c] sm:$0xf]
    %v111 = vld [vmem:[#allocation5] sm:$0xf]
    %v112 = vld [vmem:[#allocation5 + $0x4] sm:$0xf]
    %v113 = vld [vmem:[#allocation5 + $0x8] sm:$0xf]
    %v114 = vld [vmem:[#allocation5 + $0xc] sm:$0xf]
    %v115 = vld [vmem:[#allocation5 + $0x10] sm:$0xf]
    %v116 = vld [vmem:[#allocation5 + $0x14] sm:$0xf]
    %v117 = vld [vmem:[#allocation5 + $0x18] sm:$0xf]
    %v118 = vld [vmem:[#allocation5 + $0x1c] sm:$0xf]
    %v119 = vld [vmem:[#allocation7] sm:$0xf]
    %v120 = vld [vmem:[#allocation7 + $0x4] sm:$0xf]
    %v121 = vld [vmem:[#allocation7 + $0x8] sm:$0xf]
    %v122 = vld [vmem:[#allocation7 + $0xc] sm:$0xf]
    %v123 = vld [vmem:[#allocation7 + $0x10] sm:$0xf]
    %v124 = vld [vmem:[#allocation7 + $0x14] sm:$0xf]
    %v125 = vld [vmem:[#allocation7 + $0x18] sm:$0xf]
    %v126 = vld [vmem:[#allocation7 + $0x1c] sm:$0xf]
    %v127 = vld [vmem:[#allocation7 + $0x20] sm:$0xf]
    %v128 = vld [vmem:[#allocation7 + $0x24] sm:$0xf]
    %v129 = vld [vmem:[#allocation7 + $0x28] sm:$0xf]
    %v130 = vld [vmem:[#allocation7 + $0x2c] sm:$0xf]
    %v131 = vld [vmem:[#allocation7 + $0x30] sm:$0xf]
    %v132 = vld [vmem:[#allocation7 + $0x34] sm:$0xf]
    %v133 = vld [vmem:[#allocation7 + $0x38] sm:$0xf]
    %v134 = vld [vmem:[#allocation7 + $0x3c] sm:$0xf]
    %v143 = vunpack.c.l.b16 %v103
    %v144 = vunpack.c.l.b16 %v104
    %v145 = vunpack.c.l.b16 %v105
    %v146 = vunpack.c.l.b16 %v106
    %v147 = vunpack.c.l.b16 %v107
    %v148 = vunpack.c.l.b16 %v108
    %v149 = vunpack.c.l.b16 %v109
    %v150 = vunpack.c.l.b16 %v110
    %v151 = vpack.c.b16 %v144, %v143
    %v152 = vpack.c.b16 %v146, %v145
    %v153 = vpack.c.b16 %v148, %v147
    %v154 = vpack.c.b16 %v150, %v149
    %v175 = vunpack.c.l.b16 %v119
    %v176 = vunpack.c.l.b16 %v120
    %v177 = vunpack.c.l.b16 %v121
    %v178 = vunpack.c.l.b16 %v122
    %v179 = vunpack.c.l.b16 %v123
    %v180 = vunpack.c.l.b16 %v124
    %v181 = vunpack.c.l.b16 %v125
    %v182 = vunpack.c.l.b16 %v126
    %v183 = vunpack.c.l.b16 %v127
    %v184 = vunpack.c.l.b16 %v128
    %v185 = vunpack.c.l.b16 %v129
    %v186 = vunpack.c.l.b16 %v130
    %v187 = vunpack.c.l.b16 %v131
    %v188 = vunpack.c.l.b16 %v132
    %v189 = vunpack.c.l.b16 %v133
    %v190 = vunpack.c.l.b16 %v134
    %v191 = vpack.c.b16 %v176, %v175
    %v192 = vpack.c.b16 %v178, %v177
    %v193 = vpack.c.b16 %v180, %v179
    %v194 = vpack.c.b16 %v182, %v181
    %v195 = vpack.c.b16 %v184, %v183
    %v196 = vpack.c.b16 %v186, %v185
    %v197 = vpack.c.b16 %v188, %v187
    %v198 = vpack.c.b16 %v190, %v189
    %207 = vmatprep.subr.bf16.mxu0 0
    %208 = vmatpush1.bf16.msra.mxu0 %v191
    %209 = vmatprep.subr.bf16.mxu0 0
    %210 = vmatpush1.bf16.msra.mxu0 %v192
    %211 = vmatprep.subr.bf16.mxu0 0
    %212 = vmatpush1.bf16.msra.mxu0 %v193
    %213 = vmatprep.subr.bf16.mxu0 0
    %214 = vmatpush1.bf16.msra.mxu0 %v194
    %215 = vmatprep.subr.bf16.mxu0 0
    %216 = vmatpush1.bf16.msra.mxu0 %v195
    %217 = vmatprep.subr.bf16.mxu0 0
    %218 = vmatpush1.bf16.msra.mxu0 %v196
    %219 = vmatprep.subr.bf16.mxu0 0
    %220 = vmatpush1.bf16.msra.mxu0 %v197
    %221 = vmatprep.subr.bf16.mxu0 0
    %222 = vmatpush1.bf16.msra.mxu0 %v198
    %223 = vmatprep.subr.bf16.mxu0 0
    %224 = vmatpush1.bf16.msra.mxu0 0
    %225 = vmatprep.subr.bf16.mxu0 0
    %226 = vmatpush1.bf16.msra.mxu0 0
    %227 = vmatprep.subr.bf16.mxu0 0
    %228 = vmatpush1.bf16.msra.mxu0 0
    %229 = vmatprep.subr.bf16.mxu0 0
    %230 = vmatpush1.bf16.msra.mxu0 0
    %231 = vmatprep.subr.bf16.mxu0 0
    %232 = vmatpush1.bf16.msra.mxu0 0
    %233 = vmatprep.subr.bf16.mxu0 0
    %234 = vmatpush1.bf16.msra.mxu0 0
    %235 = vmatprep.subr.bf16.mxu0 0
    %236 = vmatpush1.bf16.msra.mxu0 0
    %237 = vmatprep.subr.bf16.mxu0 0
    %238 = vmatpush1.bf16.msra.mxu0 0
    %239 = vmatprep.mubr.bf16.mxu0 0
    %240 = vmatmul.mubr.bf16.gmra.mrb[0].mxu0 %v151
    %v241 = vpop.f32.mrb[0].mxu0
    %v242 = vadd.f32 0.0, %v241
    %v243 = vpop.f32.mrb[0].mxu0
    %v244 = vpop.f32.mrb[0].mxu0
    %v245 = vadd.f32 0.0, %v244
    %v246 = vpop.f32.mrb[0].mxu0
    %247 = vmatprep.mubr.bf16.mxu0 0
    %248 = vmatmul.mubr.bf16.gmra.mrb[0].mxu0 %v152
    %v249 = vpop.f32.mrb[0].mxu0
    %v250 = vadd.f32 0.0, %v249
    %v251 = vpop.f32.mrb[0].mxu0
    %v252 = vpop.f32.mrb[0].mxu0
    %v253 = vadd.f32 0.0, %v252
    %v254 = vpop.f32.mrb[0].mxu0
    %255 = vmatprep.mubr.bf16.mxu0 0
    %256 = vmatmul.mubr.bf16.gmra.mrb[0].mxu0 %v153
    %v257 = vpop.f32.mrb[0].mxu0
    %v258 = vadd.f32 0.0, %v257
    %v259 = vpop.f32.mrb[0].mxu0
    %v260 = vpop.f32.mrb[0].mxu0
    %v261 = vadd.f32 0.0, %v260
    %v262 = vpop.f32.mrb[0].mxu0
    %263 = vmatprep.mubr.bf16.mxu0 0
    %264 = vmatmul.mubr.bf16.gmra.mrb[0].mxu0 %v154
    %v265 = vpop.f32.mrb[0].mxu0
    %v266 = vadd.f32 0.0, %v265
    %v267 = vpop.f32.mrb[0].mxu0
    %v268 = vpop.f32.mrb[0].mxu0
    %v269 = vadd.f32 0.0, %v268
    %v270 = vpop.f32.mrb[0].mxu0
    %271 = vdwg.mxu0
    %v272 = vpack.c.bf16 %v245, %v242
    %v273 = vpack.c.bf16 %v253, %v250
    %v274 = vpack.c.bf16 %v261, %v258
    %v275 = vpack.c.bf16 %v269, %v266
    %v276 = vld [vmem:[#allocation8] sm:$0x1]
    %v278 = vlaneseq
    %v279 = vshrl.u32 %v278, 7
    %v280 = vsub.s32 0, %v279
    %v281 = vrot.slane %v276, %v280
    %v291 = vunpack.c.l.b16 %v111
    %v292 = vunpack.c.l.b16 %v112
    %v293 = vunpack.c.l.b16 %v113
    %v294 = vunpack.c.l.b16 %v114
    %v295 = vunpack.c.l.b16 %v115
    %v296 = vunpack.c.l.b16 %v116
    %v297 = vunpack.c.l.b16 %v117
    %v298 = vunpack.c.l.b16 %v118
    %v299 = vpack.c.b16 %v292, %v291
    %v300 = vpack.c.b16 %v294, %v293
    %v301 = vpack.c.b16 %v296, %v295
    %v302 = vpack.c.b16 %v298, %v297
    %vm303 = vcmask 523264
    %v305 = vsel %vm303, %v299, 0
    %v308 = vsel %vm303, %v300, 0
    %v311 = vsel %vm303, %v301, 0
    %v314 = vsel %vm303, %v302, 0
    %316 = vmatprep.subr.bf16.mxu0 0
    %317 = vmatpush1.bf16.msra.mxu0 %v272
    %318 = vmatprep.subr.bf16.mxu0 0
    %319 = vmatpush1.bf16.msra.mxu0 %v273
    %320 = vmatprep.subr.bf16.mxu0 0
    %321 = vmatpush1.bf16.msra.mxu0 %v274
    %322 = vmatprep.subr.bf16.mxu0 0
    %323 = vmatpush1.bf16.msra.mxu0 %v275
    %324 = vmatprep.subr.bf16.mxu0 0
    %325 = vmatpush1.bf16.msra.mxu0 0
    %326 = vmatprep.subr.bf16.mxu0 0
    %327 = vmatpush1.bf16.msra.mxu0 0
    %328 = vmatprep.subr.bf16.mxu0 0
    %329 = vmatpush1.bf16.msra.mxu0 0
    %330 = vmatprep.subr.bf16.mxu0 0
    %331 = vmatpush1.bf16.msra.mxu0 0
    %332 = vmatprep.subr.bf16.mxu0 0
    %333 = vmatpush1.bf16.msra.mxu0 0
    %334 = vmatprep.subr.bf16.mxu0 0
    %335 = vmatpush1.bf16.msra.mxu0 0
    %336 = vmatprep.subr.bf16.mxu0 0
    %337 = vmatpush1.bf16.msra.mxu0 0
    %338 = vmatprep.subr.bf16.mxu0 0
    %339 = vmatpush1.bf16.msra.mxu0 0
    %340 = vmatprep.subr.bf16.mxu0 0
    %341 = vmatpush1.bf16.msra.mxu0 0
    %342 = vmatprep.subr.bf16.mxu0 0
    %343 = vmatpush1.bf16.msra.mxu0 0
    %344 = vmatprep.subr.bf16.mxu0 0
    %345 = vmatpush1.bf16.msra.mxu0 0
    %346 = vmatprep.subr.bf16.mxu0 0
    %347 = vmatpush1.bf16.msra.mxu0 0
    %348 = vmatprep.mubr.bf16.mxu0 0
    %349 = vmatmul.mubr.bf16.gmra.mrb[0].mxu0 %v305
    %v350 = vpop.f32.mrb[0].mxu0
    %v351 = vadd.f32 %v281, %v350
    %v352 = vpop.f32.mrb[0].mxu0
    %v353 = vpop.f32.mrb[0].mxu0
    %v354 = vadd.f32 %v281, %v353
    %v355 = vpop.f32.mrb[0].mxu0
    %356 = vmatprep.mubr.bf16.mxu0 0
    %357 = vmatmul.mubr.bf16.gmra.mrb[0].mxu0 %v308
    %v358 = vpop.f32.mrb[0].mxu0
    %v359 = vadd.f32 %v281, %v358
    %v360 = vpop.f32.mrb[0].mxu0
    %v361 = vpop.f32.mrb[0].mxu0
    %v362 = vadd.f32 %v281, %v361
    %v363 = vpop.f32.mrb[0].mxu0
    %364 = vmatprep.mubr.bf16.mxu0 0
    %365 = vmatmul.mubr.bf16.gmra.mrb[0].mxu0 %v311
    %v366 = vpop.f32.mrb[0].mxu0
    %v367 = vadd.f32 %v281, %v366
    %v368 = vpop.f32.mrb[0].mxu0
    %v369 = vpop.f32.mrb[0].mxu0
    %v370 = vadd.f32 %v281, %v369
    %v371 = vpop.f32.mrb[0].mxu0
    %372 = vmatprep.mubr.bf16.mxu0 0
    %373 = vmatmul.mubr.bf16.gmra.mrb[0].mxu0 %v314
    %v374 = vpop.f32.mrb[0].mxu0
    %v375 = vadd.f32 %v281, %v374
    %v376 = vpop.f32.mrb[0].mxu0
    %v377 = vpop.f32.mrb[0].mxu0
    %v378 = vadd.f32 %v281, %v377
    %v379 = vpop.f32.mrb[0].mxu0
    %380 = vdwg.mxu0
    %v381 = vmax.f32 %v351, 0.0
    %v382 = vmax.f32 %v354, 0.0
    %v383 = vmax.f32 %v359, 0.0
    %v384 = vmax.f32 %v362, 0.0
    %v385 = vmax.f32 %v367, 0.0
    %v386 = vmax.f32 %v370, 0.0
    %v387 = vmax.f32 %v375, 0.0
    %v388 = vmax.f32 %v378, 0.0
    %v389 = vpack.c.bf16 %v382, %v381
    %v390 = vpack.c.bf16 %v384, %v383
    %v391 = vpack.c.bf16 %v386, %v385
    %v392 = vpack.c.bf16 %v388, %v387
    %v393 = vld [vmem:[#allocation10] sm:$0xf]
    %v394 = vld [vmem:[#allocation10 + $0x4] sm:$0xf]
    %v395 = vld [vmem:[#allocation10 + $0x8] sm:$0xf]
    %v396 = vld [vmem:[#allocation10 + $0xc] sm:$0xf]
    %v397 = vld [vmem:[#allocation10 + $0x10] sm:$0xf]
    %v398 = vld [vmem:[#allocation10 + $0x14] sm:$0xf]
    %v399 = vld [vmem:[#allocation10 + $0x18] sm:$0xf]
    %v400 = vld [vmem:[#allocation10 + $0x1c] sm:$0xf]
    %v401 = vld [vmem:[#allocation10 + $0x20] sm:$0xf]
    %v402 = vld [vmem:[#allocation10 + $0x24] sm:$0xf]
    %v403 = vld [vmem:[#allocation10 + $0x28] sm:$0xf]
    %v404 = vld [vmem:[#allocation10 + $0x2c] sm:$0xf]
    %v405 = vld [vmem:[#allocation10 + $0x30] sm:$0xf]
    %v406 = vld [vmem:[#allocation10 + $0x34] sm:$0xf]
    %v407 = vld [vmem:[#allocation10 + $0x38] sm:$0xf]
    %v408 = vld [vmem:[#allocation10 + $0x3c] sm:$0xf]
    %v425 = vunpack.c.l.b16 %v393
    %v426 = vunpack.c.l.b16 %v394
    %v427 = vunpack.c.l.b16 %v395
    %v428 = vunpack.c.l.b16 %v396
    %v429 = vunpack.c.l.b16 %v397
    %v430 = vunpack.c.l.b16 %v398
    %v431 = vunpack.c.l.b16 %v399
    %v432 = vunpack.c.l.b16 %v400
    %v433 = vunpack.c.l.b16 %v401
    %v434 = vunpack.c.l.b16 %v402
    %v435 = vunpack.c.l.b16 %v403
    %v436 = vunpack.c.l.b16 %v404
    %v437 = vunpack.c.l.b16 %v405
    %v438 = vunpack.c.l.b16 %v406
    %v439 = vunpack.c.l.b16 %v407
    %v440 = vunpack.c.l.b16 %v408
    %v441 = vpack.c.b16 %v426, %v425
    %v442 = vpack.c.b16 %v428, %v427
    %v443 = vpack.c.b16 %v430, %v429
    %v444 = vpack.c.b16 %v432, %v431
    %v445 = vpack.c.b16 %v434, %v433
    %v446 = vpack.c.b16 %v436, %v435
    %v447 = vpack.c.b16 %v438, %v437
    %v448 = vpack.c.b16 %v440, %v439
    %457 = vmatprep.subr.bf16.mxu0 0
    %458 = vmatpush1.bf16.msra.mxu0 %v441
    %459 = vmatprep.subr.bf16.mxu0 0
    %460 = vmatpush1.bf16.msra.mxu0 %v442
    %461 = vmatprep.subr.bf16.mxu0 0
    %462 = vmatpush1.bf16.msra.mxu0 %v443
    %463 = vmatprep.subr.bf16.mxu0 0
    %464 = vmatpush1.bf16.msra.mxu0 %v444
    %465 = vmatprep.subr.bf16.mxu0 0
    %466 = vmatpush1.bf16.msra.mxu0 %v445
    %467 = vmatprep.subr.bf16.mxu0 0
    %468 = vmatpush1.bf16.msra.mxu0 %v446
    %469 = vmatprep.subr.bf16.mxu0 0
    %470 = vmatpush1.bf16.msra.mxu0 %v447
    %471 = vmatprep.subr.bf16.mxu0 0
    %472 = vmatpush1.bf16.msra.mxu0 %v448
    %473 = vmatprep.subr.bf16.mxu0 0
    %474 = vmatpush1.bf16.msra.mxu0 0
    %475 = vmatprep.subr.bf16.mxu0 0
    %476 = vmatpush1.bf16.msra.mxu0 0
    %477 = vmatprep.subr.bf16.mxu0 0
    %478 = vmatpush1.bf16.msra.mxu0 0
    %479 = vmatprep.subr.bf16.mxu0 0
    %480 = vmatpush1.bf16.msra.mxu0 0
    %481 = vmatprep.subr.bf16.mxu0 0
    %482 = vmatpush1.bf16.msra.mxu0 0
    %483 = vmatprep.subr.bf16.mxu0 0
    %484 = vmatpush1.bf16.msra.mxu0 0
    %485 = vmatprep.subr.bf16.mxu0 0
    %486 = vmatpush1.bf16.msra.mxu0 0
    %487 = vmatprep.subr.bf16.mxu0 0
    %488 = vmatpush1.bf16.msra.mxu0 0
    %489 = vmatprep.mubr.bf16.mxu0 0
    %490 = vmatmul.mubr.bf16.gmra.mrb[0].mxu0 %v389
    %v491 = vpop.f32.mrb[0].mxu0
    %v492 = vadd.f32 0.0, %v491
    %v493 = vpop.f32.mrb[0].mxu0
    %v494 = vpop.f32.mrb[0].mxu0
    %v495 = vadd.f32 0.0, %v494
    %v496 = vpop.f32.mrb[0].mxu0
    %497 = vmatprep.mubr.bf16.mxu0 0
    %498 = vmatmul.mubr.bf16.gmra.mrb[0].mxu0 %v390
    %v499 = vpop.f32.mrb[0].mxu0
    %v500 = vadd.f32 0.0, %v499
    %v501 = vpop.f32.mrb[0].mxu0
    %v502 = vpop.f32.mrb[0].mxu0
    %v503 = vadd.f32 0.0, %v502
    %v504 = vpop.f32.mrb[0].mxu0
    %505 = vmatprep.mubr.bf16.mxu0 0
    %506 = vmatmul.mubr.bf16.gmra.mrb[0].mxu0 %v391
    %v507 = vpop.f32.mrb[0].mxu0
    %v508 = vadd.f32 0.0, %v507
    %v509 = vpop.f32.mrb[0].mxu0
    %v510 = vpop.f32.mrb[0].mxu0
    %v511 = vadd.f32 0.0, %v510
    %v512 = vpop.f32.mrb[0].mxu0
    %513 = vmatprep.mubr.bf16.mxu0 0
    %514 = vmatmul.mubr.bf16.gmra.mrb[0].mxu0 %v392
    %v515 = vpop.f32.mrb[0].mxu0
    %v516 = vadd.f32 0.0, %v515
    %v517 = vpop.f32.mrb[0].mxu0
    %v518 = vpop.f32.mrb[0].mxu0
    %v519 = vadd.f32 0.0, %v518
    %v520 = vpop.f32.mrb[0].mxu0
    %521 = vdwg.mxu0
    %v522 = vpack.c.bf16 %v495, %v492
    %v523 = vpack.c.bf16 %v503, %v500
    %v524 = vpack.c.bf16 %v511, %v508
    %v525 = vpack.c.bf16 %v519, %v516
    %v526 = vld [vmem:[#allocation11] sm:$0x1]
    %v528 = vlaneseq
    %v529 = vshrl.u32 %v528, 7
    %v530 = vsub.s32 0, %v529
    %v531 = vrot.slane %v526, %v530
    %533 = vmatprep.subr.bf16.mxu0 0
    %534 = vmatpush1.bf16.msra.mxu0 %v522
    %535 = vmatprep.subr.bf16.mxu0 0
    %536 = vmatpush1.bf16.msra.mxu0 %v523
    %537 = vmatprep.subr.bf16.mxu0 0
    %538 = vmatpush1.bf16.msra.mxu0 %v524
    %539 = vmatprep.subr.bf16.mxu0 0
    %540 = vmatpush1.bf16.msra.mxu0 %v525
    %541 = vmatprep.subr.bf16.mxu0 0
    %542 = vmatpush1.bf16.msra.mxu0 0
    %543 = vmatprep.subr.bf16.mxu0 0
    %544 = vmatpush1.bf16.msra.mxu0 0
    %545 = vmatprep.subr.bf16.mxu0 0
    %546 = vmatpush1.bf16.msra.mxu0 0
    %547 = vmatprep.subr.bf16.mxu0 0
    %548 = vmatpush1.bf16.msra.mxu0 0
    %549 = vmatprep.subr.bf16.mxu0 0
    %550 = vmatpush1.bf16.msra.mxu0 0
    %551 = vmatprep.subr.bf16.mxu0 0
    %552 = vmatpush1.bf16.msra.mxu0 0
    %553 = vmatprep.subr.bf16.mxu0 0
    %554 = vmatpush1.bf16.msra.mxu0 0
    %555 = vmatprep.subr.bf16.mxu0 0
    %556 = vmatpush1.bf16.msra.mxu0 0
    %557 = vmatprep.subr.bf16.mxu0 0
    %558 = vmatpush1.bf16.msra.mxu0 0
    %559 = vmatprep.subr.bf16.mxu0 0
    %560 = vmatpush1.bf16.msra.mxu0 0
    %561 = vmatprep.subr.bf16.mxu0 0
    %562 = vmatpush1.bf16.msra.mxu0 0
    %563 = vmatprep.subr.bf16.mxu0 0
    %564 = vmatpush1.bf16.msra.mxu0 0
    %565 = vmatprep.mubr.bf16.mxu0 0
    %566 = vmatmul.mubr.bf16.gmra.mrb[0].mxu0 %v305
    %v567 = vpop.f32.mrb[0].mxu0
    %v568 = vadd.f32 %v531, %v567
    %v569 = vpop.f32.mrb[0].mxu0
    %v570 = vpop.f32.mrb[0].mxu0
    %v571 = vadd.f32 %v531, %v570
    %v572 = vpop.f32.mrb[0].mxu0
    %573 = vmatprep.mubr.bf16.mxu0 0
    %574 = vmatmul.mubr.bf16.gmra.mrb[0].mxu0 %v308
    %v575 = vpop.f32.mrb[0].mxu0
    %v576 = vadd.f32 %v531, %v575
    %v577 = vpop.f32.mrb[0].mxu0
    %v578 = vpop.f32.mrb[0].mxu0
    %v579 = vadd.f32 %v531, %v578
    %v580 = vpop.f32.mrb[0].mxu0
    %581 = vmatprep.mubr.bf16.mxu0 0
    %582 = vmatmul.mubr.bf16.gmra.mrb[0].mxu0 %v311
    %v583 = vpop.f32.mrb[0].mxu0
    %v584 = vadd.f32 %v531, %v583
    %v585 = vpop.f32.mrb[0].mxu0
    %v586 = vpop.f32.mrb[0].mxu0
    %v587 = vadd.f32 %v531, %v586
    %v588 = vpop.f32.mrb[0].mxu0
    %589 = vmatprep.mubr.bf16.mxu0 0
    %590 = vmatmul.mubr.bf16.gmra.mrb[0].mxu0 %v314
    %v591 = vpop.f32.mrb[0].mxu0
    %v592 = vadd.f32 %v531, %v591
    %v593 = vpop.f32.mrb[0].mxu0
    %v594 = vpop.f32.mrb[0].mxu0
    %v595 = vadd.f32 %v531, %v594
    %v596 = vpop.f32.mrb[0].mxu0
    %597 = vdwg.mxu0
    %598 = vst [vmem:[#allocation13] sm:$0xff] %v568
    %599 = vst [vmem:[#allocation13 + $0x8] sm:$0xff] %v571
    %600 = vst [vmem:[#allocation13 + $0x10] sm:$0xff] %v576
    %601 = vst [vmem:[#allocation13 + $0x18] sm:$0xff] %v579
    %602 = vst [vmem:[#allocation13 + $0x20] sm:$0xff] %v584
    %603 = vst [vmem:[#allocation13 + $0x28] sm:$0xff] %v587
    %604 = vst [vmem:[#allocation13 + $0x30] sm:$0xff] %v592
    %605 = vst [vmem:[#allocation13 + $0x38] sm:$0xff] %v595
    // Predicated region
    $region50: #{tpu_custom_call.1} parent=1 // pred_check
      _
    $region51: #{tpu_custom_call.1} parent=1 // pred_check_branch
      %607 = sbr.rel (0) target = $region53
    $region52: #{tpu_custom_call.1} parent=1 // pred_region
      %s609 = ssub.s32 1024, 1024
      %610 = vsyncadd [#allocation4], %s609
      %s611 = sshll.u32 [#allocation13], 4
      %s612 = int_to_ptr.vmem [resolvable:$true] %s611
      %617 = dma.vmem_to_hbm [thread:$0]  %s612, 1024, %s6, [#allocation4], 128, 128, 8
    $region53: #{tpu_custom_call.1} parent=1 // pred_fallthru
      _
    // Predicated region
    $region54: #{tpu_custom_call.1} parent=1 // pred_check
      _
    $region55: #{tpu_custom_call.1} parent=1 // pred_check_branch
      %619 = sbr.rel (0) target = $region57
    $region56: #{tpu_custom_call.1} parent=1 // pred_region
      %620 = dma.done [#allocation4], 1024
    $region57: #{tpu_custom_call.1} parent=1 // pred_fallthru
      _
    %621 = vsyncpa [#allocation3], 1
    %622 = vsyncpa [#allocation6], 1
    %623 = vsyncpa [#allocation9], 1
    %624 = vsyncpa [#allocation12], 1
    %625 = vsyncpa [#allocation4], 1

</llo_original>
